<compile_context>
chip_gen: v7x
topology: tpu7x:2x2x1
jax: 0.10.0
libtpu: 0.0.40
codegen_flags: <defaults>
</compile_context>

<pallas_src>
import jax
import jax.numpy as jnp
from jax import lax
from jax.experimental import pallas as pl
from jax.experimental.pallas import tpu as pltpu


def _make_bcedice_kernel(tr, r_valid, tiles_hi, need_mask):
    """Build the reduction kernel for the current geometry.

    Grid = (batch, channel, split, row-tile).
      x_ref, t_ref : (tr, 128) logits / targets for the current tile (native
                     dtype; upcast to f32 in-kernel).
      out_ref      : (4, 8, 128) f32 accumulator, resident across the row-tile
                     axis: [0]=sum BCE, [1]=sum sigmoid, [2]=sum target,
                     [3]=sum sigmoid*target.
    """

    def kernel(x_ref, t_ref, out_ref):
        s = pl.program_id(2)
        j = pl.program_id(3)

        @pl.when(j == 0)
        def _():
            out_ref[...] = jnp.zeros_like(out_ref)

        x = x_ref[...].astype(jnp.float32)
        t = t_ref[...].astype(jnp.float32)

        if need_mask:
            # Rows at/past r_valid are undefined (partial last block) or belong
            # to a clamped "ghost" tile of the megacore split: force them to
            # (-40, 0), which contributes exactly 0 to every sum below.
            row0 = (s * tiles_hi + j) * tr
            rows = lax.broadcasted_iota(jnp.int32, (tr, 128), 0) + row0
            keep = rows < r_valid
            x = jnp.where(keep, x, -40.0)
            t = jnp.where(keep, t, 0.0)

        # One tanh + one log per element (EUP) gives both terms:
        #   sigmoid(x)       = 0.5 * (1 + tanh(x/2))
        #   log1p(exp(-|x|)) = -log(0.5 * (1 + |tanh(x/2)|))
        th = jnp.tanh(0.5 * x)
        sig = 0.5 * (1.0 + th)
        log_term = -jnp.log(0.5 * (1.0 + jnp.abs(th)))
        bce = jnp.maximum(x, 0.0) - x * t + log_term

        def fold(v):  # (tr, 128) -> (8, 128) lane/sublane-dense partial sum
            return v.reshape(tr // 8, 8, 128).sum(axis=0)

        out_ref[0] += fold(bce)
        out_ref[1] += fold(sig)
        out_ref[2] += fold(t)
        out_ref[3] += fold(sig * t)

    return kernel


def _bce_dice_loss_impl(inputs, targets, *, tr_max=None):
    """JAX/Pallas equivalent of the PyTorch BCEDiceLoss.forward."""
    B, C = inputs.shape[0], inputs.shape[1]
    Ct = targets.shape[1]
    assert C >= 3 and Ct >= 3, "BCEDiceLoss uses the first 3 channels"
    S = 1
    for d in inputs.shape[2:]:
        S *= d
    N = B * S  # true (unpadded) element count per channel slice

    if tr_max is None:
        itemsize = max(jnp.dtype(inputs.dtype).itemsize,
                       jnp.dtype(targets.dtype).itemsize)
        tr_max = 4096 if itemsize < 4 else 2048

    # Flatten spatial dims (free reshape: trailing dims are contiguous).
    x = inputs.reshape(B, C, S)
    t = targets.reshape(B, Ct, S)

    if S % 1024 == 0:
        # Fast path: no pad, no channel-slice copy. Channels 0..2 are picked by
        # the BlockSpec index_map; the lane-dense reshape is free.
        R = S // 128
        xp = x.reshape(B, C, R, 128)
        tp = t.reshape(B, Ct, R, 128)
    else:
        # Lane/sublane remainder: pad (<= 1023 elements per slab) with values
        # that contribute exactly 0 to every sum.  Slice to the 3 used channels
        # first so the unavoidable copy touches only needed data.
        Sp = ((S + 1023) // 1024) * 1024
        xs = jnp.pad(x[:, :3], ((0, 0), (0, 0), (0, Sp - S)),
                     constant_values=-40.0)
        ts = jnp.pad(t[:, :3], ((0, 0), (0, 0), (0, Sp - S)),
                     constant_values=0)
        R = Sp // 128
        xp = xs.reshape(B, 3, R, 128)
        tp = ts.reshape(B, 3, R, 128)

    # Row-tile geometry (R is a multiple of 8 in both paths above).
    TR = max(8, (min(tr_max, R) // 8) * 8)
    num_tiles = pl.cdiv(R, TR)
    # Megacore balance (v7x): with B == 1 the parallel space B*3 = 3 leaves one
    # TensorCore idle; split the reduction range in two when possible.
    split = 2 if (B * 3 < 4 and num_tiles >= 2) else 1
    tiles_hi = pl.cdiv(num_tiles, split)
    clamp = (split * tiles_hi) != num_tiles
    need_mask = (split * tiles_hi * TR) != R

    def in_map(b, c, s, j):
        tile = s * tiles_hi + j
        if clamp:  # ghost tiles re-read the last real tile; kernel masks them
            tile = jnp.minimum(tile, num_tiles - 1)
        return (b, c, tile, 0)

    kernel = _make_bcedice_kernel(TR, R, tiles_hi, need_mask)

    out = pl.pallas_call(
        kernel,
        out_shape=jax.ShapeDtypeStruct((B, 3, split, 4, 8, 128), jnp.float32),
        grid_spec=pltpu.PrefetchScalarGridSpec(
            num_scalar_prefetch=0,
            grid=(B, 3, split, tiles_hi),
            in_specs=[
                pl.BlockSpec((None, None, TR, 128), in_map),
                pl.BlockSpec((None, None, TR, 128), in_map),
            ],
            out_specs=pl.BlockSpec((None, None, None, 4, 8, 128),
                                   lambda b, c, s, j: (b, c, s, 0, 0, 0)),
        ),
        compiler_params=pltpu.CompilerParams(
            dimension_semantics=("parallel", "parallel", "parallel",
                                 "arbitrary"),
            vmem_limit_bytes=32 * 1024 * 1024,
        ),
    )(xp, tp)

    # (B, 3, split, 4, 8, 128) -> per-channel totals over batch/split/partials.
    sums = out.sum(axis=(0, 2, 4, 5))  # (3, 4)
    bce_mean = sums[:, 0] / N
    smooth = 1e-5
    num = 2.0 * sums[:, 3] + smooth
    den = sums[:, 1] + sums[:, 2] + smooth
    dice = 1.0 - num / den
    return jnp.mean(dice + 0.5 * bce_mean)


bce_dice_loss = jax.jit(_bce_dice_loss_impl, static_argnames=("tr_max",))


def _reference_loss(inputs, targets):
    """Pure-JAX reference mirroring the PyTorch forward exactly."""
    loss = 0.0
    for i in range(3):
        x = inputs[:, i].astype(jnp.float32)
        t = targets[:, i].astype(jnp.float32)
        bce = jnp.mean(jnp.maximum(x, 0.0) - x * t +
                       jnp.log1p(jnp.exp(-jnp.abs(x))))
        smooth = 1e-5
        s = jax.nn.sigmoid(x)
        num = 2.0 * jnp.sum(s * t) + smooth
        den = jnp.sum(s) + jnp.sum(t) + smooth
        dice = 1.0 - num / den
        loss = loss + dice + 0.5 * bce
    return loss / 3.0


if __name__ == "__main__":
    key = jax.random.PRNGKey(0)
    ks = jax.random.split(key, 6)

    # Case 1: canonical module shape, 1024-aligned spatial -> no-pad fast path.
    x1 = jax.random.normal(ks[0], (2, 3, 16, 16, 16), dtype=jnp.float32)
    t1 = (jax.random.uniform(ks[1], (2, 3, 16, 16, 16)) > 0.5).astype(jnp.float32)
    o1 = bce_dice_loss(x1, t1)
    jax.block_until_ready(o1)
    r1 = _reference_loss(x1, t1)
    assert jnp.allclose(o1, r1, rtol=1e-3, atol=1e-4), (o1, r1)

    # Case 2: C > 3 (channel selection via BlockSpec index_map, no slice copy)
    # with bf16 logits/targets -> exercises in-kernel upcast + dtype-scaled TR.
    x2 = jax.random.normal(ks[2], (2, 4, 8, 8, 16), dtype=jnp.bfloat16)
    t2 = (jax.random.uniform(ks[3], (2, 4, 8, 8, 16)) > 0.5).astype(jnp.bfloat16)
    o2 = bce_dice_loss(x2, t2)
    jax.block_until_ready(o2)
    r2 = _reference_loss(x2, t2)
    assert jnp.allclose(o2, r2, rtol=1e-3, atol=1e-4), (o2, r2)

    # Case 3: B=1, C>3, non-aligned spatial, tiny tr_max -> pad path, ragged
    # tile masking, multi-tile accumulation and the megacore split with
    # ghost-tile clamping.
    x3 = jax.random.normal(ks[4], (1, 4, 10, 10, 30), dtype=jnp.float32)
    t3 = (jax.random.uniform(ks[5], (1, 4, 10, 10, 30)) > 0.5).astype(jnp.float32)
    o3 = bce_dice_loss(x3, t3, tr_max=8)
    jax.block_until_ready(o3)
    r3 = _reference_loss(x3, t3)
    assert jnp.allclose(o3, r3, rtol=1e-3, atol=1e-4), (o3, r3)

    print("KERNEL_OK")
</pallas_src>

<mosaic_0001>
module attributes {stable_mosaic.version = 11 : i64} {
  func.func @kernel(%arg0: i32, %arg1: i32, %arg2: i32, %arg3: i32, %arg4: memref<1x1x32x128xf32, #tpu.memory_space<vmem>>, %arg5: memref<1x1x32x128xf32, #tpu.memory_space<vmem>>, %arg6: memref<1x1x1x4x8x128xf32, #tpu.memory_space<vmem>>) attributes {dimension_semantics = [#tpu.dimension_semantics<parallel>, #tpu.dimension_semantics<parallel>, #tpu.dimension_semantics<parallel>, #tpu.dimension_semantics<arbitrary>], iteration_bounds = array<i64: 2, 3, 1, 1>, scalar_prefetch = 0 : i64, scratch_operands = 0 : i64, tpu.core_type = #tpu.core_type<tc>, window_params = [{transform_indices = @transform_0, window_bounds = array<i64: 1, 1, 32, 128>}, {transform_indices = @transform_1, window_bounds = array<i64: 1, 1, 32, 128>}, {transform_indices = @transform_2, window_bounds = array<i64: 1, 1, 1, 4, 8, 128>}]} {
    %c0_i32 = arith.constant 0 : i32
    %0 = arith.cmpi eq, %arg3, %c0_i32 : i32
    %1 = arith.extui %0 : i1 to i32
    %c0_i32_0 = arith.constant 0 : i32
    %2 = arith.cmpi ne, %1, %c0_i32_0 : i32
    scf.if %2 {
      %cst_63 = arith.constant 0.000000e+00 : f32
      %60 = vector.broadcast %cst_63 : f32 to vector<4x8x128xf32>
      %c0_64 = arith.constant 0 : index
      %c0_65 = arith.constant 0 : index
      %c0_66 = arith.constant 0 : index
      %c0_67 = arith.constant 0 : index
      %c0_68 = arith.constant 0 : index
      %c0_69 = arith.constant 0 : index
      %61 = vector.load %arg6[%c0_64, %c0_65, %c0_66, %c0_67, %c0_68, %c0_69] : memref<1x1x1x4x8x128xf32, #tpu.memory_space<vmem>>, vector<1x1x1x4x8x128xf32>
      %62 = vector.shape_cast %61 : vector<1x1x1x4x8x128xf32> to vector<4x8x128xf32>
      %63 = vector.shape_cast %60 : vector<4x8x128xf32> to vector<1x1x1x4x8x128xf32>
      tpu.vector_store %arg6[%c0_64, %c0_65, %c0_66, %c0_67, %c0_68, %c0_69], %63 {strides = array<i32>} : memref<1x1x1x4x8x128xf32, #tpu.memory_space<vmem>>, vector<1x1x1x4x8x128xf32>,
    } else {
    }
    %c0 = arith.constant 0 : index
    %c0_1 = arith.constant 0 : index
    %c0_2 = arith.constant 0 : index
    %c0_3 = arith.constant 0 : index
    %3 = vector.load %arg4[%c0, %c0_1, %c0_2, %c0_3] : memref<1x1x32x128xf32, #tpu.memory_space<vmem>>, vector<1x1x32x128xf32>
    %4 = vector.shape_cast %3 : vector<1x1x32x128xf32> to vector<32x128xf32>
    %c0_4 = arith.constant 0 : index
    %c0_5 = arith.constant 0 : index
    %c0_6 = arith.constant 0 : index
    %c0_7 = arith.constant 0 : index
    %5 = vector.load %arg5[%c0_4, %c0_5, %c0_6, %c0_7] : memref<1x1x32x128xf32, #tpu.memory_space<vmem>>, vector<1x1x32x128xf32>
    %6 = vector.shape_cast %5 : vector<1x1x32x128xf32> to vector<32x128xf32>
    %cst = arith.constant 5.000000e-01 : f32
    %7 = vector.broadcast %cst : f32 to vector<32x128xf32>
    %8 = arith.mulf %7, %4 : vector<32x128xf32>
    %9 = math.tanh %8 : vector<32x128xf32>
    %cst_8 = arith.constant 1.000000e+00 : f32
    %10 = vector.broadcast %cst_8 : f32 to vector<32x128xf32>
    %11 = arith.addf %10, %9 : vector<32x128xf32>
    %cst_9 = arith.constant 5.000000e-01 : f32
    %12 = vector.broadcast %cst_9 : f32 to vector<32x128xf32>
    %13 = arith.mulf %12, %11 : vector<32x128xf32>
    %14 = math.absf %9 : vector<32x128xf32>
    %cst_10 = arith.constant 1.000000e+00 : f32
    %15 = vector.broadcast %cst_10 : f32 to vector<32x128xf32>
    %16 = arith.addf %15, %14 : vector<32x128xf32>
    %cst_11 = arith.constant 5.000000e-01 : f32
    %17 = vector.broadcast %cst_11 : f32 to vector<32x128xf32>
    %18 = arith.mulf %17, %16 : vector<32x128xf32>
    %19 = math.log %18 : vector<32x128xf32>
    %cst_12 = arith.constant 0.000000e+00 : f32
    %20 = vector.broadcast %cst_12 : f32 to vector<32x128xf32>
    %21 = arith.subf %20, %19 : vector<32x128xf32>
    %cst_13 = arith.constant 0.000000e+00 : f32
    %22 = vector.broadcast %cst_13 : f32 to vector<32x128xf32>
    %23 = arith.maximumf %4, %22 : vector<32x128xf32>
    %24 = arith.mulf %4, %6 : vector<32x128xf32>
    %25 = arith.subf %23, %24 : vector<32x128xf32>
    %26 = arith.addf %25, %21 : vector<32x128xf32>
    %c0_14 = arith.constant 0 : index
    %c0_15 = arith.constant 0 : index
    %c0_16 = arith.constant 0 : index
    %c0_17 = arith.constant 0 : index
    %c0_18 = arith.constant 0 : index
    %c0_19 = arith.constant 0 : index
    %27 = vector.load %arg6[%c0_14, %c0_15, %c0_16, %c0_17, %c0_18, %c0_19] : memref<1x1x1x4x8x128xf32, #tpu.memory_space<vmem>>, vector<1x1x1x1x8x128xf32>
    %28 = vector.shape_cast %27 : vector<1x1x1x1x8x128xf32> to vector<8x128xf32>
    %29 = vector.shape_cast %26 : vector<32x128xf32> to vector<4x8x128xf32>
    %cst_20 = arith.constant dense<0.000000e+00> : vector<8x128xf32>
    %30 = vector.multi_reduction <add>, %29, %cst_20 [0] : vector<4x8x128xf32> to vector<8x128xf32>
    %31 = arith.addf %28, %30 : vector<8x128xf32>
    %c0_21 = arith.constant 0 : index
    %c0_22 = arith.constant 0 : index
    %c0_23 = arith.constant 0 : index
    %c0_24 = arith.constant 0 : index
    %c0_25 = arith.constant 0 : index
    %c0_26 = arith.constant 0 : index
    %32 = vector.load %arg6[%c0_21, %c0_22, %c0_23, %c0_24, %c0_25, %c0_26] : memref<1x1x1x4x8x128xf32, #tpu.memory_space<vmem>>, vector<1x1x1x1x8x128xf32>
    %33 = vector.shape_cast %32 : vector<1x1x1x1x8x128xf32> to vector<8x128xf32>
    %34 = vector.shape_cast %31 : vector<8x128xf32> to vector<1x1x1x1x8x128xf32>
    tpu.vector_store %arg6[%c0_21, %c0_22, %c0_23, %c0_24, %c0_25, %c0_26], %34 {strides = array<i32>} : memref<1x1x1x4x8x128xf32, #tpu.memory_space<vmem>>, vector<1x1x1x1x8x128xf32>,
    %c0_27 = arith.constant 0 : index
    %c0_28 = arith.constant 0 : index
    %c0_29 = arith.constant 0 : index
    %c1 = arith.constant 1 : index
    %c0_30 = arith.constant 0 : index
    %c0_31 = arith.constant 0 : index
    %35 = vector.load %arg6[%c0_27, %c0_28, %c0_29, %c1, %c0_30, %c0_31] : memref<1x1x1x4x8x128xf32, #tpu.memory_space<vmem>>, vector<1x1x1x1x8x128xf32>
    %36 = vector.shape_cast %35 : vector<1x1x1x1x8x128xf32> to vector<8x128xf32>
    %37 = vector.shape_cast %13 : vector<32x128xf32> to vector<4x8x128xf32>
    %cst_32 = arith.constant dense<0.000000e+00> : vector<8x128xf32>
    %38 = vector.multi_reduction <add>, %37, %cst_32 [0] : vector<4x8x128xf32> to vector<8x128xf32>
    %39 = arith.addf %36, %38 : vector<8x128xf32>
    %c0_33 = arith.constant 0 : index
    %c0_34 = arith.constant 0 : index
    %c0_35 = arith.constant 0 : index
    %c1_36 = arith.constant 1 : index
    %c0_37 = arith.constant 0 : index
    %c0_38 = arith.constant 0 : index
    %40 = vector.load %arg6[%c0_33, %c0_34, %c0_35, %c1_36, %c0_37, %c0_38] : memref<1x1x1x4x8x128xf32, #tpu.memory_space<vmem>>, vector<1x1x1x1x8x128xf32>
    %41 = vector.shape_cast %40 : vector<1x1x1x1x8x128xf32> to vector<8x128xf32>
    %42 = vector.shape_cast %39 : vector<8x128xf32> to vector<1x1x1x1x8x128xf32>
    tpu.vector_store %arg6[%c0_33, %c0_34, %c0_35, %c1_36, %c0_37, %c0_38], %42 {strides = array<i32>} : memref<1x1x1x4x8x128xf32, #tpu.memory_space<vmem>>, vector<1x1x1x1x8x128xf32>,
    %c0_39 = arith.constant 0 : index
    %c0_40 = arith.constant 0 : index
    %c0_41 = arith.constant 0 : index
    %c2 = arith.constant 2 : index
    %c0_42 = arith.constant 0 : index
    %c0_43 = arith.constant 0 : index
    %43 = vector.load %arg6[%c0_39, %c0_40, %c0_41, %c2, %c0_42, %c0_43] : memref<1x1x1x4x8x128xf32, #tpu.memory_space<vmem>>, vector<1x1x1x1x8x128xf32>
    %44 = vector.shape_cast %43 : vector<1x1x1x1x8x128xf32> to vector<8x128xf32>
    %45 = vector.shape_cast %6 : vector<32x128xf32> to vector<4x8x128xf32>
    %cst_44 = arith.constant dense<0.000000e+00> : vector<8x128xf32>
    %46 = vector.multi_reduction <add>, %45, %cst_44 [0] : vector<4x8x128xf32> to vector<8x128xf32>
    %47 = arith.addf %44, %46 : vector<8x128xf32>
    %c0_45 = arith.constant 0 : index
    %c0_46 = arith.constant 0 : index
    %c0_47 = arith.constant 0 : index
    %c2_48 = arith.constant 2 : index
    %c0_49 = arith.constant 0 : index
    %c0_50 = arith.constant 0 : index
    %48 = vector.load %arg6[%c0_45, %c0_46, %c0_47, %c2_48, %c0_49, %c0_50] : memref<1x1x1x4x8x128xf32, #tpu.memory_space<vmem>>, vector<1x1x1x1x8x128xf32>
    %49 = vector.shape_cast %48 : vector<1x1x1x1x8x128xf32> to vector<8x128xf32>
    %50 = vector.shape_cast %47 : vector<8x128xf32> to vector<1x1x1x1x8x128xf32>
    tpu.vector_store %arg6[%c0_45, %c0_46, %c0_47, %c2_48, %c0_49, %c0_50], %50 {strides = array<i32>} : memref<1x1x1x4x8x128xf32, #tpu.memory_space<vmem>>, vector<1x1x1x1x8x128xf32>,
    %c0_51 = arith.constant 0 : index
    %c0_52 = arith.constant 0 : index
    %c0_53 = arith.constant 0 : index
    %c3 = arith.constant 3 : index
    %c0_54 = arith.constant 0 : index
    %c0_55 = arith.constant 0 : index
    %51 = vector.load %arg6[%c0_51, %c0_52, %c0_53, %c3, %c0_54, %c0_55] : memref<1x1x1x4x8x128xf32, #tpu.memory_space<vmem>>, vector<1x1x1x1x8x128xf32>
    %52 = vector.shape_cast %51 : vector<1x1x1x1x8x128xf32> to vector<8x128xf32>
    %53 = arith.mulf %13, %6 : vector<32x128xf32>
    %54 = vector.shape_cast %53 : vector<32x128xf32> to vector<4x8x128xf32>
    %cst_56 = arith.constant dense<0.000000e+00> : vector<8x128xf32>
    %55 = vector.multi_reduction <add>, %54, %cst_56 [0] : vector<4x8x128xf32> to vector<8x128xf32>
    %56 = arith.addf %52, %55 : vector<8x128xf32>
    %c0_57 = arith.constant 0 : index
    %c0_58 = arith.constant 0 : index
    %c0_59 = arith.constant 0 : index
    %c3_60 = arith.constant 3 : index
    %c0_61 = arith.constant 0 : index
    %c0_62 = arith.constant 0 : index
    %57 = vector.load %arg6[%c0_57, %c0_58, %c0_59, %c3_60, %c0_61, %c0_62] : memref<1x1x1x4x8x128xf32, #tpu.memory_space<vmem>>, vector<1x1x1x1x8x128xf32>
    %58 = vector.shape_cast %57 : vector<1x1x1x1x8x128xf32> to vector<8x128xf32>
    %59 = vector.shape_cast %56 : vector<8x128xf32> to vector<1x1x1x1x8x128xf32>
    tpu.vector_store %arg6[%c0_57, %c0_58, %c0_59, %c3_60, %c0_61, %c0_62], %59 {strides = array<i32>} : memref<1x1x1x4x8x128xf32, #tpu.memory_space<vmem>>, vector<1x1x1x1x8x128xf32>,
    return
  }
  func.func @transform_0(%arg0: i32, %arg1: i32, %arg2: i32, %arg3: i32) -> (i32, i32, i32, i32) {
    %c1_i32 = arith.constant 1 : i32
    %0 = arith.muli %arg2, %c1_i32 : i32
    %1 = arith.addi %0, %arg3 : i32
    %c0_i32 = arith.constant 0 : i32
    %c0_i32_0 = arith.constant 0 : i32
    return %arg0, %arg1, %1, %c0_i32 : i32, i32, i32, i32
  }
  func.func @transform_1(%arg0: i32, %arg1: i32, %arg2: i32, %arg3: i32) -> (i32, i32, i32, i32) {
    %c1_i32 = arith.constant 1 : i32
    %0 = arith.muli %arg2, %c1_i32 : i32
    %1 = arith.addi %0, %arg3 : i32
    %c0_i32 = arith.constant 0 : i32
    %c0_i32_0 = arith.constant 0 : i32
    return %arg0, %arg1, %1, %c0_i32 : i32, i32, i32, i32
  }
  func.func @transform_2(%arg0: i32, %arg1: i32, %arg2: i32, %arg3: i32) -> (i32, i32, i32, i32, i32, i32) {
    %c0_i32 = arith.constant 0 : i32
    %c0_i32_0 = arith.constant 0 : i32
    %c0_i32_1 = arith.constant 0 : i32
    %c0_i32_2 = arith.constant 0 : i32
    return %arg0, %arg1, %arg2, %c0_i32, %c0_i32_0, %c0_i32_1 : i32, i32, i32, i32, i32, i32
  }
}

</mosaic_0001>

<llo_original>
// kernel: _bce_dice_loss_impl.1
$region0: #{_bce_dice_loss_impl.1}
  #allocation0 [shape = 'u32[]', space=smem, size = 0x4, offset = 0x4, fixed_abs, tag = 'smem constant byte address 0x4 - core index']
  #allocation1 [shape = 'u32[144,128]{1,0:T(1,128)}', space=vmem, size = 0x12000, scoped, tag = 'internal scratch']
  %s0 = inlined_call_operand.vmem [shape: f32[2,3,32,128], index: 0, kind: input, shape index: {}]
  %s1 = inlined_call_operand.vmem [shape: f32[2,3,32,128], index: 1, kind: input, shape index: {}]
  %s2 = inlined_call_operand.vmem [shape: f32[2,3,1,4,8,128], index: 2, kind: output, shape index: {}]
  %s3 = sld [smem:[#allocation0]]
  $region45: #{_bce_dice_loss_impl.1} parent=0
    _
  %s5 = ssub.s32 1, %s3
  %s6 = scalar_select 0, %s5, %s3
  loop: start=0, step=1, limit=8
  $region2: #{_bce_dice_loss_impl.1} parent=0 // loop_pre_header
    _
  $region3: #{_bce_dice_loss_impl.1} parent=0 // loop_header
    %s8 = sphi 0, %s12
    %p9 = scmp.ge.s32.totalorder %s8, 8
    %s15 = sphi 0, %s41
    %s16 = sphi 0, %s37
    %s17 = sphi 0, %s33
    %s18 = sphi 0, %s29
    %s19 = sphi 0, %s15
    %s20 = sphi 0, %s16
    %s21 = sphi 0, %s17
    %s22 = sphi 0, %s18
    %s23 = sphi 0, %s19
    %s24 = sphi 0, %s20
    %s25 = sphi 0, %s21
    %s26 = sphi 0, %s22
    %s50 = sphi 0, %s52
    %s53 = sphi 0, %s50
    %s54 = sphi 0, %s53
    %s70 = sphi 0, %s54
    %s82 = sphi 0, %s84
    %s85 = sphi 0, %s82
    %s86 = sphi 0, %s85
    %s102 = sphi 0, %s86
    %s112 = sphi 0, %s114
    %s115 = sphi 0, %s112
    %s116 = sphi 0, %s115
    %s132 = sphi 0, %s116
  $region4: #{_bce_dice_loss_impl.1} parent=0 // loop_header_branch
    %11 = sbr.rel (%p9) target = $region8
  $region5: #{_bce_dice_loss_impl.1} parent=0 // loop_body
    %s13 = ssub.s32 %s8, 1
    %s14 = ssub.s32 %s8, 2
    %s27 = sadd.s32 1, %s18
    %p28 = scmp.ge.s32.totalorder %s27, 1
    %s29 = scalar_select %p28, 0, %s27
    %s30 = sadd.s32 1, %s17
    %s31 = scalar_select %p28, %s30, %s17
    %p32 = scmp.ge.s32.totalorder %s31, 1
    %s33 = scalar_select %p32, 0, %s31
    %s34 = sadd.s32 1, %s16
    %s35 = scalar_select %p32, %s34, %s16
    %p36 = scmp.ge.s32.totalorder %s35, 3
    %s37 = scalar_select %p36, 0, %s35
    %s38 = sadd.s32 1, %s15
    %s39 = scalar_select %p36, %s38, %s15
    %p40 = scmp.ge.s32.totalorder %s39, 2
    %s41 = scalar_select %p40, 0, %s39
    %s42 = sadd.s32 %s17, %s18
    %s43 = sadd.s32 %s33, %s29
    %s44 = ssub.s32 %s15, %s41
    %s45 = ssub.s32 %s16, %s37
    %s46 = sor.u32 %s44, %s45
    %s47 = ssub.s32 %s42, %s43
    %s48 = sor.u32 %s46, %s47
    %p49 = scmp.eq.s32.totalorder %s48, 0
    %s51 = sadd.s32 %s50, 1
    %s52 = scalar_select %p49, %s50, %s51
    %p55 = pneg %p49
    %p56 = scmp.eq.s32.totalorder %s8, 5
    %p57 = por %p55, %p56
    %p58 = scmp.ne.s32.totalorder %s50, %s53
    %p59 = scmp.eq.s32.totalorder %s8, 0
    %p60 = por %p58, %p59
    %p61 = scmp.ne.s32.totalorder %s50, %s53
    %p62 = scmp.eq.s32.totalorder %s13, 5
    %p63 = por %p61, %p62
    %p64 = scmp.ne.s32.totalorder %s53, %s54
    %p65 = scmp.eq.s32.totalorder %s13, 0
    %p66 = por %p64, %p65
    %p67 = scmp.ne.s32.totalorder %s53, %s54
    %p68 = scmp.eq.s32.totalorder %s14, 5
    %p69 = por %p67, %p68
    %p71 = scmp.ne.s32.totalorder %s54, %s70
    %p72 = scmp.eq.s32.totalorder %s14, 0
    %p73 = por %p71, %p72
    %s74 = sadd.s32 %s17, %s18
    %s75 = sadd.s32 %s33, %s29
    %s76 = ssub.s32 %s15, %s41
    %s77 = ssub.s32 %s16, %s37
    %s78 = sor.u32 %s76, %s77
    %s79 = ssub.s32 %s74, %s75
    %s80 = sor.u32 %s78, %s79
    %p81 = scmp.eq.s32.totalorder %s80, 0
    %s83 = sadd.s32 %s82, 1
    %s84 = scalar_select %p81, %s82, %s83
    %p87 = pneg %p81
    %p88 = scmp.eq.s32.totalorder %s8, 5
    %p89 = por %p87, %p88
    %p90 = scmp.ne.s32.totalorder %s82, %s85
    %p91 = scmp.eq.s32.totalorder %s8, 0
    %p92 = por %p90, %p91
    %p93 = scmp.ne.s32.totalorder %s82, %s85
    %p94 = scmp.eq.s32.totalorder %s13, 5
    %p95 = por %p93, %p94
    %p96 = scmp.ne.s32.totalorder %s85, %s86
    %p97 = scmp.eq.s32.totalorder %s13, 0
    %p98 = por %p96, %p97
    %p99 = scmp.ne.s32.totalorder %s85, %s86
    %p100 = scmp.eq.s32.totalorder %s14, 5
    %p101 = por %p99, %p100
    %p103 = scmp.ne.s32.totalorder %s86, %s102
    %p104 = scmp.eq.s32.totalorder %s14, 0
    %p105 = por %p103, %p104
    %s106 = ssub.s32 %s15, %s41
    %s107 = ssub.s32 %s16, %s37
    %s108 = sor.u32 %s106, %s107
    %s109 = ssub.s32 %s17, %s33
    %s110 = sor.u32 %s108, %s109
    %p111 = scmp.eq.s32.totalorder %s110, 0
    %s113 = sadd.s32 %s112, 1
    %s114 = scalar_select %p111, %s112, %s113
    %p117 = pneg %p111
    %p118 = scmp.eq.s32.totalorder %s8, 5
    %p119 = por %p117, %p118
    %p120 = scmp.ne.s32.totalorder %s112, %s115
    %p121 = scmp.eq.s32.totalorder %s8, 0
    %p122 = por %p120, %p121
    %p123 = scmp.ne.s32.totalorder %s112, %s115
    %p124 = scmp.eq.s32.totalorder %s13, 5
    %p125 = por %p123, %p124
    %p126 = scmp.ne.s32.totalorder %s115, %s116
    %p127 = scmp.eq.s32.totalorder %s13, 0
    %p128 = por %p126, %p127
    %p129 = scmp.ne.s32.totalorder %s115, %s116
    %p130 = scmp.eq.s32.totalorder %s14, 5
    %p131 = por %p129, %p130
    %p133 = scmp.ne.s32.totalorder %s116, %s132
    %p134 = scmp.eq.s32.totalorder %s14, 0
    %p135 = por %p133, %p134
    %p136 = scmp.le.s32.totalorder 1, %s8
    %p137 = scmp.lt.s32.totalorder %s8, 7
    %p138 = pnand %p136, %p137
    %p139 = pneg %p138
    // Predicated region
    $region9: #{_bce_dice_loss_impl.1} parent=5 // pred_check
      _
    $region10: #{_bce_dice_loss_impl.1} parent=5 // pred_check_branch
      %141 = sbr.rel (%p138) target = $region12
    $region11: #{_bce_dice_loss_impl.1} parent=5 // pred_region
      %s142 = ssub.s32 %s8, 1
    $region12: #{_bce_dice_loss_impl.1} parent=5 // pred_fallthru
      _
    %p143 = scmp.lt.s32.totalorder %s8, 6
    // Predicated region
    $region13: #{_bce_dice_loss_impl.1} parent=5 // pred_check
      %p144 = pneg %p143
    $region14: #{_bce_dice_loss_impl.1} parent=5 // pred_check_branch
      %146 = sbr.rel (%p144) target = $region16
    $region15: #{_bce_dice_loss_impl.1} parent=5 // pred_region
      // Predicated region
      $region17: #{_bce_dice_loss_impl.1} parent=15 // pred_check
        %p147 = pneg %p60
      $region18: #{_bce_dice_loss_impl.1} parent=15 // pred_check_branch
        %149 = sbr.rel (%p147) target = $region20
      $region19: #{_bce_dice_loss_impl.1} parent=15 // pred_region
        %s150 = sadd.s32 %s17, %s18
        %s151 = smul.u32 4, %s150
        %p152 = scmp.lt.s32.totalorder %s15, 1
        %s153 = scalar_select %p152, %s15, 1
        %p154 = scmp.lt.s32.totalorder %s16, 2
        %s155 = scalar_select %p154, %s16, 2
        %p156 = scmp.lt.s32.totalorder %s151, 3
        %s157 = scalar_select %p156, %s151, 3
        %s158 = smul.addr %s155, 4
        %s159 = sadd.s32 %s157, %s158
        %s160 = smul.addr %s153, 12
        %s161 = sadd.s32 %s159, %s160
        %s162 = smul.addr %s161, 8
        %s163 = scalar_lea.vmem %s0, %s162
        %s164 = sadd.s32 %s17, %s18
        %s165 = smul.u32 4, %s164
      $region20: #{_bce_dice_loss_impl.1} parent=15 // pred_fallthru
        _
      // Predicated region
      $region21: #{_bce_dice_loss_impl.1} parent=15 // pred_check
        %p166 = pneg %p92
      $region22: #{_bce_dice_loss_impl.1} parent=15 // pred_check_branch
        %168 = sbr.rel (%p166) target = $region24
      $region23: #{_bce_dice_loss_impl.1} parent=15 // pred_region
        %s169 = sadd.s32 %s17, %s18
        %s170 = smul.u32 4, %s169
        %p171 = scmp.lt.s32.totalorder %s15, 1
        %s172 = scalar_select %p171, %s15, 1
        %p173 = scmp.lt.s32.totalorder %s16, 2
        %s174 = scalar_select %p173, %s16, 2
        %p175 = scmp.lt.s32.totalorder %s170, 3
        %s176 = scalar_select %p175, %s170, 3
        %s177 = smul.addr %s174, 4
        %s178 = sadd.s32 %s176, %s177
        %s179 = smul.addr %s172, 12
        %s180 = sadd.s32 %s178, %s179
        %s181 = smul.addr %s180, 8
        %s182 = scalar_lea.vmem %s1, %s181
        %s183 = sadd.s32 %s17, %s18
        %s184 = smul.u32 4, %s183
      $region24: #{_bce_dice_loss_impl.1} parent=15 // pred_fallthru
        _
    $region16: #{_bce_dice_loss_impl.1} parent=5 // pred_fallthru
      _
    %p185 = scmp.le.s32.totalorder 1, %s8
    %p186 = scmp.lt.s32.totalorder %s8, 7
    %p187 = pnand %p185, %p186
    %p188 = pneg %p187
    // Predicated region
    $region25: #{_bce_dice_loss_impl.1} parent=5 // pred_check
      _
    $region26: #{_bce_dice_loss_impl.1} parent=5 // pred_check_branch
      %190 = sbr.rel (%p187) target = $region28
    $region27: #{_bce_dice_loss_impl.1} parent=5 // pred_region
      %s191 = ssub.s32 %s8, 1
      %s192 = sadd.s32 %s21, %s22
      %s193 = smul.u32 4, %s192
      %p194 = scmp.lt.s32.totalorder %s19, 1
      %s195 = scalar_select %p194, %s19, 1
      %p196 = scmp.lt.s32.totalorder %s20, 2
      %s197 = scalar_select %p196, %s20, 2
      %p198 = scmp.lt.s32.totalorder %s193, 3
      %s199 = scalar_select %p198, %s193, 3
      %s200 = smul.addr %s197, 4
      %s201 = sadd.s32 %s199, %s200
      %s202 = smul.addr %s195, 12
      %s203 = sadd.s32 %s201, %s202
      %s204 = smul.addr %s203, 8
      %s205 = scalar_lea.vmem %s0, %s204
      %p206 = pneg %p66
      %p207 = pneg %p63
      %s208 = sadd.s32 %s21, %s22
      %s209 = smul.u32 4, %s208
      %p210 = scmp.lt.s32.totalorder %s19, 1
      %s211 = scalar_select %p210, %s19, 1
      %p212 = scmp.lt.s32.totalorder %s20, 2
      %s213 = scalar_select %p212, %s20, 2
      %p214 = scmp.lt.s32.totalorder %s209, 3
      %s215 = scalar_select %p214, %s209, 3
      %s216 = smul.addr %s213, 4
      %s217 = sadd.s32 %s215, %s216
      %s218 = smul.addr %s211, 12
      %s219 = sadd.s32 %s217, %s218
      %s220 = smul.addr %s219, 8
      %s221 = scalar_lea.vmem %s1, %s220
      %p222 = pneg %p98
      %p223 = pneg %p95
      %p224 = pneg %p128
      %p225 = pneg %p125
      %p226 = scmp.lt.s32.totalorder %s19, 1
      %s227 = scalar_select %p226, %s19, 1
      %p228 = scmp.lt.s32.totalorder %s20, 2
      %s229 = scalar_select %p228, %s20, 2
      %p230 = scmp.lt.s32.totalorder %s21, 0
      %s231 = scalar_select %p230, %s21, 0
      %s232 = smul.addr %s231, 4
      %s233 = smul.addr %s229, 4
      %s234 = sadd.s32 %s232, %s233
      %s235 = smul.addr %s227, 12
      %s236 = sadd.s32 %s234, %s235
      %s237 = smul.addr %s236, 8
      %s238 = scalar_lea.vmem %s2, %s237
      %s239 = sadd.s32 %s21, %s22
      %s240 = smul.u32 4, %s239
      %p241 = scmp.lt.s32.totalorder %s19, 1
      %s242 = scalar_select %p241, %s19, 1
      %p243 = scmp.lt.s32.totalorder %s20, 2
      %s244 = scalar_select %p243, %s20, 2
      %p245 = scmp.lt.s32.totalorder %s240, 3
      %s246 = scalar_select %p245, %s240, 3
      %s247 = smul.addr %s244, 4
      %s248 = sadd.s32 %s246, %s247
      %s249 = smul.addr %s242, 12
      %s250 = sadd.s32 %s248, %s249
      %s251 = smul.addr %s250, 8
      %s252 = scalar_lea.vmem %s0, %s251
      %s253 = sadd.s32 %s21, %s22
      %s254 = smul.u32 4, %s253
      %s255 = sadd.s32 %s21, %s22
      %s256 = smul.u32 4, %s255
      %p257 = scmp.lt.s32.totalorder %s19, 1
      %s258 = scalar_select %p257, %s19, 1
      %p259 = scmp.lt.s32.totalorder %s20, 2
      %s260 = scalar_select %p259, %s20, 2
      %p261 = scmp.lt.s32.totalorder %s256, 3
      %s262 = scalar_select %p261, %s256, 3
      %s263 = smul.addr %s260, 4
      %s264 = sadd.s32 %s262, %s263
      %s265 = smul.addr %s258, 12
      %s266 = sadd.s32 %s264, %s265
      %s267 = smul.addr %s266, 8
      %s268 = scalar_lea.vmem %s1, %s267
      %s269 = sadd.s32 %s21, %s22
      %s270 = smul.u32 4, %s269
      %p271 = scmp.lt.s32.totalorder %s19, 1
      %s272 = scalar_select %p271, %s19, 1
      %p273 = scmp.lt.s32.totalorder %s20, 2
      %s274 = scalar_select %p273, %s20, 2
      %p275 = scmp.lt.s32.totalorder %s21, 0
      %s276 = scalar_select %p275, %s21, 0
      %s277 = smul.addr %s276, 4
      %s278 = smul.addr %s274, 4
      %s279 = sadd.s32 %s277, %s278
      %s280 = smul.addr %s272, 12
      %s281 = sadd.s32 %s279, %s280
      %s282 = smul.addr %s281, 8
      %s283 = scalar_lea.vmem %s2, %s282
      %p284 = scmp.eq.s32.totalorder %s22, 0
      // Predicated region
      $region29: #{_bce_dice_loss_impl.1} parent=27 // pred_check
        %p285 = pneg %p284
      $region30: #{_bce_dice_loss_impl.1} parent=27 // pred_check_branch
        %287 = sbr.rel (%p285) target = $region32
      $region31: #{_bce_dice_loss_impl.1} parent=27 // pred_region
        %288 = vst [vmem:[%s283] sm:$0xff] 0.0
        %289 = vst [vmem:[%s283 + $0x8] sm:$0xff] 0.0
        %290 = vst [vmem:[%s283 + $0x10] sm:$0xff] 0.0
        %291 = vst [vmem:[%s283 + $0x18] sm:$0xff] 0.0
      $region32: #{_bce_dice_loss_impl.1} parent=27 // pred_fallthru
        _
      %v292 = vld [vmem:[%s252] sm:$0xff]
      %v293 = vld [vmem:[%s252 + $0x8] sm:$0xff]
      %v294 = vld [vmem:[%s252 + $0x10] sm:$0xff]
      %v295 = vld [vmem:[%s252 + $0x18] sm:$0xff]
      %v296 = vld [vmem:[%s268] sm:$0xff]
      %v297 = vld [vmem:[%s268 + $0x8] sm:$0xff]
      %v298 = vld [vmem:[%s268 + $0x10] sm:$0xff]
      %v299 = vld [vmem:[%s268 + $0x18] sm:$0xff]
      %v300 = vmul.f32 %v292, 0.5
      %v301 = vmul.f32 %v293, 0.5
      %v302 = vmul.f32 %v294, 0.5
      %v303 = vmul.f32 %v295, 0.5
      %v304 = vtanh.pop %v300
      %v305 = vtanh.pop %v301
      %v306 = vtanh.pop %v302
      %v307 = vtanh.pop %v303
      %v308 = vadd.f32 %v304, 1.0
      %v309 = vadd.f32 %v305, 1.0
      %v310 = vadd.f32 %v306, 1.0
      %v311 = vadd.f32 %v307, 1.0
      %v312 = vmul.f32 %v308, 0.5
      %v313 = vmul.f32 %v309, 0.5
      %v314 = vmul.f32 %v310, 0.5
      %v315 = vmul.f32 %v311, 0.5
      %v316 = vand.u32 2147483647, %v304
      %v317 = vand.u32 2147483647, %v305
      %v318 = vand.u32 2147483647, %v306
      %v319 = vand.u32 2147483647, %v307
      %v320 = vadd.f32 %v316, 1.0
      %v321 = vadd.f32 %v317, 1.0
      %v322 = vadd.f32 %v318, 1.0
      %v323 = vadd.f32 %v319, 1.0
      %v324 = vmul.f32 %v320, 0.5
      %v325 = vmul.f32 %v321, 0.5
      %v326 = vmul.f32 %v322, 0.5
      %v327 = vmul.f32 %v323, 0.5
      %v328 = vlog2.pop %v324
      %v329 = vmul.f32 %v328, 0.6931472
      %v330 = vlog2.pop %v325
      %v331 = vmul.f32 %v330, 0.6931472
      %v332 = vlog2.pop %v326
      %v333 = vmul.f32 %v332, 0.6931472
      %v334 = vlog2.pop %v327
      %v335 = vmul.f32 %v334, 0.6931472
      %v336 = vsub.f32 0.0, %v329
      %v337 = vsub.f32 0.0, %v331
      %v338 = vsub.f32 0.0, %v333
      %v339 = vsub.f32 0.0, %v335
      %v340 = vmax.f32 %v292, 0.0
      %v341 = vmax.f32 %v293, 0.0
      %v342 = vmax.f32 %v294, 0.0
      %v343 = vmax.f32 %v295, 0.0
      %v344 = vmul.f32 %v292, %v296
      %v345 = vmul.f32 %v293, %v297
      %v346 = vmul.f32 %v294, %v298
      %v347 = vmul.f32 %v295, %v299
      %v348 = vsub.f32 %v340, %v344
      %v349 = vsub.f32 %v341, %v345
      %v350 = vsub.f32 %v342, %v346
      %v351 = vsub.f32 %v343, %v347
      %v352 = vadd.f32 %v348, %v336
      %v353 = vadd.f32 %v349, %v337
      %v354 = vadd.f32 %v350, %v338
      %v355 = vadd.f32 %v351, %v339
      %v356 = vld [vmem:[%s283] sm:$0xff]
      %v357 = vadd.f32 %v352, %v353
      %v358 = vadd.f32 %v357, %v354
      %v359 = vadd.f32 %v358, %v355
      %v360 = vadd.f32 %v356, %v359
      %361 = vst [vmem:[%s283] sm:$0xff] %v360
      %s362 = scalar_lea.vmem %s283, 8
      %v363 = vld [vmem:[%s362] sm:$0xff]
      %v364 = vadd.f32 %v312, %v313
      %v365 = vadd.f32 %v364, %v314
      %v366 = vadd.f32 %v365, %v315
      %v367 = vadd.f32 %v363, %v366
      %368 = vst [vmem:[%s362] sm:$0xff] %v367
      %s369 = scalar_lea.vmem %s283, 16
      %v370 = vld [vmem:[%s369] sm:$0xff]
      %v371 = vadd.f32 %v296, %v297
      %v372 = vadd.f32 %v371, %v298
      %v373 = vadd.f32 %v372, %v299
      %v374 = vadd.f32 %v370, %v373
      %375 = vst [vmem:[%s369] sm:$0xff] %v374
      %s376 = scalar_lea.vmem %s283, 24
      %v377 = vld [vmem:[%s376] sm:$0xff]
      %v378 = vmul.f32 %v312, %v296
      %v379 = vmul.f32 %v313, %v297
      %v380 = vmul.f32 %v314, %v298
      %v381 = vmul.f32 %v315, %v299
      %v382 = vadd.f32 %v378, %v379
      %v383 = vadd.f32 %v382, %v380
      %v384 = vadd.f32 %v383, %v381
      %v385 = vadd.f32 %v377, %v384
      %386 = vst [vmem:[%s376] sm:$0xff] %v385
      %p387 = scmp.lt.s32.totalorder %s19, 1
      %s388 = scalar_select %p387, %s19, 1
      %p389 = scmp.lt.s32.totalorder %s20, 2
      %s390 = scalar_select %p389, %s20, 2
      %p391 = scmp.lt.s32.totalorder %s21, 0
      %s392 = scalar_select %p391, %s21, 0
      %s393 = smul.addr %s392, 4
      %s394 = smul.addr %s390, 4
      %s395 = sadd.s32 %s393, %s394
      %s396 = smul.addr %s388, 12
      %s397 = sadd.s32 %s395, %s396
      %s398 = smul.addr %s397, 8
      %s399 = scalar_lea.vmem %s2, %s398
      // Predicated region
      $region33: #{_bce_dice_loss_impl.1} parent=27 // pred_check
        %p400 = pneg %p125
      $region34: #{_bce_dice_loss_impl.1} parent=27 // pred_check_branch
        %402 = sbr.rel (%p400) target = $region36
      $region35: #{_bce_dice_loss_impl.1} parent=27 // pred_region
        _
      $region36: #{_bce_dice_loss_impl.1} parent=27 // pred_fallthru
        _
    $region28: #{_bce_dice_loss_impl.1} parent=5 // pred_fallthru
      _
    %p403 = scmp.le.s32.totalorder 2, %s8
    // Predicated region
    $region37: #{_bce_dice_loss_impl.1} parent=5 // pred_check
      %p404 = pneg %p403
    $region38: #{_bce_dice_loss_impl.1} parent=5 // pred_check_branch
      %406 = sbr.rel (%p404) target = $region40
    $region39: #{_bce_dice_loss_impl.1} parent=5 // pred_region
      %s407 = ssub.s32 %s8, 2
      // Predicated region
      $region41: #{_bce_dice_loss_impl.1} parent=39 // pred_check
        %p408 = pneg %p131
      $region42: #{_bce_dice_loss_impl.1} parent=39 // pred_check_branch
        %410 = sbr.rel (%p408) target = $region44
      $region43: #{_bce_dice_loss_impl.1} parent=39 // pred_region
        %p411 = scmp.lt.s32.totalorder %s23, 1
        %s412 = scalar_select %p411, %s23, 1
        %p413 = scmp.lt.s32.totalorder %s24, 2
        %s414 = scalar_select %p413, %s24, 2
        %p415 = scmp.lt.s32.totalorder %s25, 0
        %s416 = scalar_select %p415, %s25, 0
        %s417 = smul.addr %s416, 4
        %s418 = smul.addr %s414, 4
        %s419 = sadd.s32 %s417, %s418
        %s420 = smul.addr %s412, 12
        %s421 = sadd.s32 %s419, %s420
        %s422 = smul.addr %s421, 8
        %s423 = scalar_lea.vmem %s2, %s422
      $region44: #{_bce_dice_loss_impl.1} parent=39 // pred_fallthru
        _
    $region40: #{_bce_dice_loss_impl.1} parent=5 // pred_fallthru
      _
  $region6: #{_bce_dice_loss_impl.1} parent=0 // loop_footer
    %s12 = sadd.s32 1, %s8
  $region7: #{_bce_dice_loss_impl.1} parent=0 // loop_footer_branch
    %7 = sbr.rel target = $region3
  $region8: #{_bce_dice_loss_impl.1} parent=0 // loop_exit
    _

</llo_original>
